<compile_context>
chip_gen: v7x
topology: tpu7x:2x2x1
jax: 0.10.0
libtpu: 0.0.40
codegen_flags: <defaults>
</compile_context>

<pallas_src>
import jax
import jax.numpy as jnp
from jax.experimental import pallas as pl
from jax.experimental.pallas import tpu as pltpu

_LANES = 128


def _sublane_multiple(dtype):
    itemsize = jnp.dtype(dtype).itemsize
    return {4: 8, 2: 16, 1: 32}.get(itemsize, 8)


def _max_tile_rows():
    # 4096 f32 rows -> 8 MiB of double-buffered inputs per step (fits the v5e
    # 16 MiB default scoped VMEM).  On v7x (3.2 TB/s HBM, 32 MiB default
    # scoped VMEM) use 8192 rows so each step moves ~8-16 MiB and stays close
    # to the HBM roofline.
    try:
        kind = jax.devices()[0].device_kind.lower()
    except Exception:  # pragma: no cover
        kind = ""
    return 8192 if "v7" in kind else 4096


def _dice_sums_kernel(pred_ref, target_ref, out_ref, acc_t, acc_s, acc_st):
    """Accumulates sum(t), sum(sigmoid(p)), sum(sigmoid(p)*t) for one shard.

    acc_* are (8, 128) f32 accumulators updated with pure VPU vreg-wise adds;
    the XLU collapse to scalars and the lane-dense (8, 128) output store
    happen once in the per-shard epilogue.  Output row 0 lanes:
      lane 0: sum(t)   lane 1: sum(sigmoid(p))   lane 2: sum(sigmoid(p)*t)
    """
    i = pl.program_id(1)

    @pl.when(i == 0)
    def _():
        acc_t[...] = jnp.zeros_like(acc_t)
        acc_s[...] = jnp.zeros_like(acc_s)
        acc_st[...] = jnp.zeros_like(acc_st)

    p = pred_ref[...].astype(jnp.float32)
    t = target_ref[...].astype(jnp.float32)
    # sigmoid(x) = 0.5 * (tanh(x/2) + 1): a single EUP push per pred vreg.
    s = 0.5 * (jnp.tanh(0.5 * p) + 1.0)

    tile_rows = p.shape[0]
    nvreg = tile_rows // 8
    # (tile_rows, 128) -> (nvreg, 8, 128) is a layout-preserving regrouping of
    # native (8, 128) vreg tiles; the axis-0 sum is vreg-wise VPU adds.
    acc_t[...] += t.reshape(nvreg, 8, _LANES).sum(axis=0)
    acc_s[...] += s.reshape(nvreg, 8, _LANES).sum(axis=0)
    acc_st[...] += (s * t).reshape(nvreg, 8, _LANES).sum(axis=0)

    @pl.when(i == pl.num_programs(1) - 1)
    def _():
        sum_t = jnp.sum(acc_t[...])
        sum_s = jnp.sum(acc_s[...])
        sum_st = jnp.sum(acc_st[...])
        lane = jax.lax.broadcasted_iota(jnp.int32, (1, 8, _LANES), 2)
        out_ref[...] = jnp.where(
            lane == 0, sum_t,
            jnp.where(lane == 1, sum_s,
                      jnp.where(lane == 2, sum_st, 0.0)))


def _kernel_partial_sums(pred2, target2, tile_rows, num_shards, steps_per_shard):
    in_spec = pl.BlockSpec(
        (tile_rows, _LANES), lambda c, i: (c * steps_per_shard + i, 0))
    out = pl.pallas_call(
        _dice_sums_kernel,
        out_shape=jax.ShapeDtypeStruct((num_shards, 8, _LANES), jnp.float32),
        grid_spec=pltpu.PrefetchScalarGridSpec(
            num_scalar_prefetch=0,
            grid=(num_shards, steps_per_shard),
            in_specs=[in_spec, in_spec],
            out_specs=pl.BlockSpec((1, 8, _LANES), lambda c, i: (c, 0, 0)),
            scratch_shapes=[
                pltpu.VMEM((8, _LANES), jnp.float32),
                pltpu.VMEM((8, _LANES), jnp.float32),
                pltpu.VMEM((8, _LANES), jnp.float32),
            ],
        ),
        compiler_params=pltpu.CompilerParams(
            dimension_semantics=("parallel", "arbitrary")),
    )(pred2, target2)
    # Row 0 of every shard's (8, 128) block carries the sums in lanes 0..2.
    sums = jnp.sum(out[:, 0, :], axis=0)
    return sums[0], sums[1], sums[2]


def weighted_binary_dice_loss(pred, target,
                              foreground_weight=1.0,
                              background_weight=0.1,
                              smooth=1e-5):
    """Forward pass of WeightedBinaryDiceLoss (targets assumed binary {0,1})."""
    if pred.shape != target.shape:
        raise ValueError(f"Shape mismatch: pred {pred.shape}, target {target.shape}")

    if target.dtype == jnp.bool_:
        target = target.astype(jnp.int8)

    n = pred.size
    pred_flat = pred.reshape(-1)
    target_flat = target.reshape(-1)

    sub = max(_sublane_multiple(pred.dtype), _sublane_multiple(target.dtype))
    rows_total = n // _LANES
    tile_rows = min(_max_tile_rows(), (rows_total // sub) * sub)

    sum_t = sum_s = sum_st = jnp.float32(0.0)
    n_main = 0
    if tile_rows > 0:
        block = tile_rows * _LANES
        total_steps = n // block
        num_shards = 2 if total_steps >= 2 else 1   # 2 TensorCores on v7x
        total_steps = (total_steps // num_shards) * num_shards
        n_main = total_steps * block
        if n_main > 0:
            steps_per_shard = total_steps // num_shards
            rows_main = n_main // _LANES
            # When n is block-aligned (common case) this is a free bitcast
            # reshape of the whole input -- no padded copy is ever made.
            pred2 = pred_flat[:n_main].reshape(rows_main, _LANES)
            target2 = target_flat[:n_main].reshape(rows_main, _LANES)
            sum_t, sum_s, sum_st = _kernel_partial_sums(
                pred2, target2, tile_rows, num_shards, steps_per_shard)

    if n_main < n:
        # Ragged tail (< 2 * tile_rows * 128 elements): plain-JAX sums folded
        # into the glue instead of jnp.pad-copying the full arrays.
        p_tail = pred_flat[n_main:].astype(jnp.float32)
        t_tail = target_flat[n_main:].astype(jnp.float32)
        s_tail = jax.nn.sigmoid(p_tail)
        sum_t = sum_t + jnp.sum(t_tail)
        sum_s = sum_s + jnp.sum(s_tail)
        sum_st = sum_st + jnp.sum(s_tail * t_tail)

    fg = jnp.float32(foreground_weight)
    bg = jnp.float32(background_weight)
    sm = jnp.float32(smooth)
    nf = jnp.float32(n)

    # Branch A (sum(target) == 0, binary targets => all targets are 0):
    #   agreement = 1 - |sigmoid(p) - 0| = 1 - sigmoid(p)
    #   dice = (2*bg*sum(agreement) + smooth) / (2*bg*N + smooth)
    dice_a = (2.0 * bg * (nf - sum_s) + sm) / (2.0 * bg * nf + sm)

    # Branch B (binary targets, w = fg where t==1 else bg):
    #   intersection = sum(w*s*t) = fg * sum(s*t)
    #   union        = sum(w*s) + sum(w*t)
    #                = bg*sum(s) + (fg-bg)*sum(s*t) + fg*sum(t)
    inter = fg * sum_st
    union = bg * sum_s + (fg - bg) * sum_st + fg * sum_t
    dice_b = (2.0 * inter + sm) / (union + sm)

    dice = jnp.where(sum_t == 0.0, dice_a, dice_b)
    return 1.0 - dice


def _reference(pred, target, fg=1.0, bg=0.1, smooth=1e-5):
    p = jax.nn.sigmoid(pred.astype(jnp.float32)).reshape(-1)
    t = target.reshape(-1).astype(jnp.float32)
    agreement = 1.0 - jnp.abs(p - t)
    dice_a = (2.0 * jnp.sum(bg * agreement) + smooth) / (2.0 * bg * t.size + smooth)
    w = jnp.where(t == 1.0, fg, bg)
    inter = jnp.sum(w * p * t)
    union = jnp.sum(w * p) + jnp.sum(w * t)
    dice_b = (2.0 * inter + smooth) / (union + smooth)
    return 1.0 - jnp.where(jnp.sum(t) == 0.0, dice_a, dice_b)


if __name__ == "__main__":
    key = jax.random.PRNGKey(0)
    k1, k2, k3, k4 = jax.random.split(key, 4)

    # NCHW-like shapes, consistent with a segmentation logit / binary mask pair.
    pred = jax.random.normal(k1, (2, 4, 16, 16), dtype=jnp.float32)
    target = (jax.random.uniform(k2, (2, 4, 16, 16)) > 0.7).astype(jnp.float32)
    target_empty = jnp.zeros_like(target)  # exercises the sum(target)==0 branch

    loss = jax.block_until_ready(weighted_binary_dice_loss(pred, target))
    loss_empty = jax.block_until_ready(weighted_binary_dice_loss(pred, target_empty))

    ref = _reference(pred, target)
    ref_empty = _reference(pred, target_empty)
    assert jnp.allclose(loss, ref, atol=1e-5, rtol=1e-4), (loss, ref)
    assert jnp.allclose(loss_empty, ref_empty, atol=1e-5, rtol=1e-4), (loss_empty, ref_empty)

    # Non-aligned size: kernel on the aligned prefix, plain-JAX tail in glue.
    pred_odd = jax.random.normal(k1, (3, 5, 7, 11), dtype=jnp.float32)
    target_odd = (jax.random.uniform(k2, (3, 5, 7, 11)) > 0.6).astype(jnp.float32)
    loss_odd = jax.block_until_ready(weighted_binary_dice_loss(pred_odd, target_odd))
    ref_odd = _reference(pred_odd, target_odd)
    assert jnp.allclose(loss_odd, ref_odd, atol=1e-5, rtol=1e-4), (loss_odd, ref_odd)

    # Narrow dtypes (bf16 logits, int8 mask) + multi-step / dual-shard path.
    pred_nd = jax.random.normal(k3, (2, 1, 1024, 512), dtype=jnp.bfloat16)
    target_nd = (jax.random.uniform(k4, (2, 1, 1024, 512)) > 0.7).astype(jnp.int8)
    loss_nd = jax.block_until_ready(weighted_binary_dice_loss(pred_nd, target_nd))
    ref_nd = _reference(pred_nd.astype(jnp.float32), target_nd.astype(jnp.float32))
    assert jnp.allclose(loss_nd, ref_nd, atol=1e-3, rtol=1e-3), (loss_nd, ref_nd)

    print("KERNEL_OK")
</pallas_src>

<mosaic_0001>
module attributes {stable_mosaic.version = 11 : i64} {
  func.func @_dice_sums_kernel(%arg0: i32, %arg1: i32, %arg2: memref<16x128xf32, #tpu.memory_space<vmem>>, %arg3: memref<16x128xf32, #tpu.memory_space<vmem>>, %arg4: memref<1x8x128xf32, #tpu.memory_space<vmem>>, %arg5: memref<8x128xf32, #tpu.memory_space<vmem>>, %arg6: memref<8x128xf32, #tpu.memory_space<vmem>>, %arg7: memref<8x128xf32, #tpu.memory_space<vmem>>) attributes {dimension_semantics = [#tpu.dimension_semantics<parallel>, #tpu.dimension_semantics<arbitrary>], iteration_bounds = array<i64: 1, 1>, scalar_prefetch = 0 : i64, scratch_operands = 3 : i64, tpu.core_type = #tpu.core_type<tc>, window_params = [{transform_indices = @transform_0, window_bounds = array<i64: 16, 128>}, {transform_indices = @transform_1, window_bounds = array<i64: 16, 128>}, {transform_indices = @transform_2, window_bounds = array<i64: 1, 8, 128>}]} {
    %c0_i32 = arith.constant 0 : i32
    %0 = arith.cmpi eq, %arg1, %c0_i32 : i32
    %1 = arith.extui %0 : i1 to i32
    %c0_i32_0 = arith.constant 0 : i32
    %2 = arith.cmpi ne, %1, %c0_i32_0 : i32
    scf.if %2 {
      %cst_23 = arith.constant 0.000000e+00 : f32
      %31 = vector.broadcast %cst_23 : f32 to vector<8x128xf32>
      %c0_24 = arith.constant 0 : index
      %c0_25 = arith.constant 0 : index
      %32 = vector.load %arg5[%c0_24, %c0_25] : memref<8x128xf32, #tpu.memory_space<vmem>>, vector<8x128xf32>
      tpu.vector_store %arg5[%c0_24, %c0_25], %31 {strides = array<i32>} : memref<8x128xf32, #tpu.memory_space<vmem>>, vector<8x128xf32>,
      %cst_26 = arith.constant 0.000000e+00 : f32
      %33 = vector.broadcast %cst_26 : f32 to vector<8x128xf32>
      %c0_27 = arith.constant 0 : index
      %c0_28 = arith.constant 0 : index
      %34 = vector.load %arg6[%c0_27, %c0_28] : memref<8x128xf32, #tpu.memory_space<vmem>>, vector<8x128xf32>
      tpu.vector_store %arg6[%c0_27, %c0_28], %33 {strides = array<i32>} : memref<8x128xf32, #tpu.memory_space<vmem>>, vector<8x128xf32>,
      %cst_29 = arith.constant 0.000000e+00 : f32
      %35 = vector.broadcast %cst_29 : f32 to vector<8x128xf32>
      %c0_30 = arith.constant 0 : index
      %c0_31 = arith.constant 0 : index
      %36 = vector.load %arg7[%c0_30, %c0_31] : memref<8x128xf32, #tpu.memory_space<vmem>>, vector<8x128xf32>
      tpu.vector_store %arg7[%c0_30, %c0_31], %35 {strides = array<i32>} : memref<8x128xf32, #tpu.memory_space<vmem>>, vector<8x128xf32>,
    } else {
    }
    %c0 = arith.constant 0 : index
    %c0_1 = arith.constant 0 : index
    %3 = vector.load %arg2[%c0, %c0_1] : memref<16x128xf32, #tpu.memory_space<vmem>>, vector<16x128xf32>
    %c0_2 = arith.constant 0 : index
    %c0_3 = arith.constant 0 : index
    %4 = vector.load %arg3[%c0_2, %c0_3] : memref<16x128xf32, #tpu.memory_space<vmem>>, vector<16x128xf32>
    %cst = arith.constant 5.000000e-01 : f32
    %5 = vector.broadcast %cst : f32 to vector<16x128xf32>
    %6 = arith.mulf %5, %3 : vector<16x128xf32>
    %7 = math.tanh %6 : vector<16x128xf32>
    %cst_4 = arith.constant 1.000000e+00 : f32
    %8 = vector.broadcast %cst_4 : f32 to vector<16x128xf32>
    %9 = arith.addf %7, %8 : vector<16x128xf32>
    %cst_5 = arith.constant 5.000000e-01 : f32
    %10 = vector.broadcast %cst_5 : f32 to vector<16x128xf32>
    %11 = arith.mulf %10, %9 : vector<16x128xf32>
    %c0_6 = arith.constant 0 : index
    %c0_7 = arith.constant 0 : index
    %12 = vector.load %arg5[%c0_6, %c0_7] : memref<8x128xf32, #tpu.memory_space<vmem>>, vector<8x128xf32>
    %13 = vector.shape_cast %4 : vector<16x128xf32> to vector<2x8x128xf32>
    %cst_8 = arith.constant dense<0.000000e+00> : vector<8x128xf32>
    %14 = vector.multi_reduction <add>, %13, %cst_8 [0] : vector<2x8x128xf32> to vector<8x128xf32>
    %15 = arith.addf %12, %14 : vector<8x128xf32>
    %c0_9 = arith.constant 0 : index
    %c0_10 = arith.constant 0 : index
    %16 = vector.load %arg5[%c0_9, %c0_10] : memref<8x128xf32, #tpu.memory_space<vmem>>, vector<8x128xf32>
    tpu.vector_store %arg5[%c0_9, %c0_10], %15 {strides = array<i32>} : memref<8x128xf32, #tpu.memory_space<vmem>>, vector<8x128xf32>,
    %c0_11 = arith.constant 0 : index
    %c0_12 = arith.constant 0 : index
    %17 = vector.load %arg6[%c0_11, %c0_12] : memref<8x128xf32, #tpu.memory_space<vmem>>, vector<8x128xf32>
    %18 = vector.shape_cast %11 : vector<16x128xf32> to vector<2x8x128xf32>
    %cst_13 = arith.constant dense<0.000000e+00> : vector<8x128xf32>
    %19 = vector.multi_reduction <add>, %18, %cst_13 [0] : vector<2x8x128xf32> to vector<8x128xf32>
    %20 = arith.addf %17, %19 : vector<8x128xf32>
    %c0_14 = arith.constant 0 : index
    %c0_15 = arith.constant 0 : index
    %21 = vector.load %arg6[%c0_14, %c0_15] : memref<8x128xf32, #tpu.memory_space<vmem>>, vector<8x128xf32>
    tpu.vector_store %arg6[%c0_14, %c0_15], %20 {strides = array<i32>} : memref<8x128xf32, #tpu.memory_space<vmem>>, vector<8x128xf32>,
    %c0_16 = arith.constant 0 : index
    %c0_17 = arith.constant 0 : index
    %22 = vector.load %arg7[%c0_16, %c0_17] : memref<8x128xf32, #tpu.memory_space<vmem>>, vector<8x128xf32>
    %23 = arith.mulf %11, %4 : vector<16x128xf32>
    %24 = vector.shape_cast %23 : vector<16x128xf32> to vector<2x8x128xf32>
    %cst_18 = arith.constant dense<0.000000e+00> : vector<8x128xf32>
    %25 = vector.multi_reduction <add>, %24, %cst_18 [0] : vector<2x8x128xf32> to vector<8x128xf32>
    %26 = arith.addf %22, %25 : vector<8x128xf32>
    %c0_19 = arith.constant 0 : index
    %c0_20 = arith.constant 0 : index
    %27 = vector.load %arg7[%c0_19, %c0_20] : memref<8x128xf32, #tpu.memory_space<vmem>>, vector<8x128xf32>
    tpu.vector_store %arg7[%c0_19, %c0_20], %26 {strides = array<i32>} : memref<8x128xf32, #tpu.memory_space<vmem>>, vector<8x128xf32>,
    %c0_i32_21 = arith.constant 0 : i32
    %28 = arith.cmpi eq, %arg1, %c0_i32_21 : i32
    %29 = arith.extui %28 : i1 to i32
    %c0_i32_22 = arith.constant 0 : i32
    %30 = arith.cmpi ne, %29, %c0_i32_22 : i32
    scf.if %30 {
      %c0_23 = arith.constant 0 : index
      %c0_24 = arith.constant 0 : index
      %31 = vector.load %arg5[%c0_23, %c0_24] : memref<8x128xf32, #tpu.memory_space<vmem>>, vector<8x128xf32>
      %32 = vector.shape_cast %31 : vector<8x128xf32> to vector<1x8x128xf32>
      %cst_25 = arith.constant dense<0.000000e+00> : vector<1xf32>
      %33 = vector.multi_reduction <add>, %32, %cst_25 [1, 2] : vector<1x8x128xf32> to vector<1xf32>
      %34 = vector.shape_cast %33 : vector<1xf32> to vector<1x1x1xf32>
      %35 = vector.extract %34[0, 0, 0] : f32 from vector<1x1x1xf32>
      %c0_26 = arith.constant 0 : index
      %c0_27 = arith.constant 0 : index
      %36 = vector.load %arg6[%c0_26, %c0_27] : memref<8x128xf32, #tpu.memory_space<vmem>>, vector<8x128xf32>
      %37 = vector.shape_cast %36 : vector<8x128xf32> to vector<1x8x128xf32>
      %cst_28 = arith.constant dense<0.000000e+00> : vector<1xf32>
      %38 = vector.multi_reduction <add>, %37, %cst_28 [1, 2] : vector<1x8x128xf32> to vector<1xf32>
      %39 = vector.shape_cast %38 : vector<1xf32> to vector<1x1x1xf32>
      %40 = vector.extract %39[0, 0, 0] : f32 from vector<1x1x1xf32>
      %c0_29 = arith.constant 0 : index
      %c0_30 = arith.constant 0 : index
      %41 = vector.load %arg7[%c0_29, %c0_30] : memref<8x128xf32, #tpu.memory_space<vmem>>, vector<8x128xf32>
      %42 = vector.shape_cast %41 : vector<8x128xf32> to vector<1x8x128xf32>
      %cst_31 = arith.constant dense<0.000000e+00> : vector<1xf32>
      %43 = vector.multi_reduction <add>, %42, %cst_31 [1, 2] : vector<1x8x128xf32> to vector<1xf32>
      %44 = vector.shape_cast %43 : vector<1xf32> to vector<1x1x1xf32>
      %45 = vector.extract %44[0, 0, 0] : f32 from vector<1x1x1xf32>
      %46 = tpu.iota {dimensions = array<i32: 2>} : vector<1x8x128xi32>
      %c0_i32_32 = arith.constant 0 : i32
      %47 = vector.broadcast %c0_i32_32 : i32 to vector<1x8x128xi32>
      %48 = arith.cmpi eq, %46, %47 : vector<1x8x128xi32>
      %c1_i32 = arith.constant 1 : i32
      %49 = vector.broadcast %c1_i32 : i32 to vector<1x8x128xi32>
      %50 = arith.cmpi eq, %46, %49 : vector<1x8x128xi32>
      %c2_i32 = arith.constant 2 : i32
      %51 = vector.broadcast %c2_i32 : i32 to vector<1x8x128xi32>
      %52 = arith.cmpi eq, %46, %51 : vector<1x8x128xi32>
      %cst_33 = arith.constant 0.000000e+00 : f32
      %53 = vector.broadcast %45 : f32 to vector<1x8x128xf32>
      %54 = vector.broadcast %cst_33 : f32 to vector<1x8x128xf32>
      %55 = arith.select %52, %53, %54 : vector<1x8x128xi1>, vector<1x8x128xf32>
      %56 = vector.broadcast %40 : f32 to vector<1x8x128xf32>
      %57 = arith.select %50, %56, %55 : vector<1x8x128xi1>, vector<1x8x128xf32>
      %58 = vector.broadcast %35 : f32 to vector<1x8x128xf32>
      %59 = arith.select %48, %58, %57 : vector<1x8x128xi1>, vector<1x8x128xf32>
      %c0_34 = arith.constant 0 : index
      %c0_35 = arith.constant 0 : index
      %c0_36 = arith.constant 0 : index
      %60 = vector.load %arg4[%c0_34, %c0_35, %c0_36] : memref<1x8x128xf32, #tpu.memory_space<vmem>>, vector<1x8x128xf32>
      tpu.vector_store %arg4[%c0_34, %c0_35, %c0_36], %59 {strides = array<i32>} : memref<1x8x128xf32, #tpu.memory_space<vmem>>, vector<1x8x128xf32>,
    } else {
    }
    return
  }
  func.func @transform_0(%arg0: i32, %arg1: i32) -> (i32, i32) {
    %c1_i32 = arith.constant 1 : i32
    %0 = arith.muli %arg0, %c1_i32 : i32
    %1 = arith.addi %0, %arg1 : i32
    %c0_i32 = arith.constant 0 : i32
    %c0_i32_0 = arith.constant 0 : i32
    return %1, %c0_i32 : i32, i32
  }
  func.func @transform_1(%arg0: i32, %arg1: i32) -> (i32, i32) {
    %c1_i32 = arith.constant 1 : i32
    %0 = arith.muli %arg0, %c1_i32 : i32
    %1 = arith.addi %0, %arg1 : i32
    %c0_i32 = arith.constant 0 : i32
    %c0_i32_0 = arith.constant 0 : i32
    return %1, %c0_i32 : i32, i32
  }
  func.func @transform_2(%arg0: i32, %arg1: i32) -> (i32, i32, i32) {
    %c0_i32 = arith.constant 0 : i32
    %c0_i32_0 = arith.constant 0 : i32
    %c0_i32_1 = arith.constant 0 : i32
    return %arg0, %c0_i32, %c0_i32_0 : i32, i32, i32
  }
}

</mosaic_0001>

<llo_original>
// kernel: tpu_custom_call.1
$region0: #{tpu_custom_call.1}
  #allocation0 [shape = 'u32[]', space=smem, size = 0x4, offset = 0x4, fixed_abs, tag = 'smem constant byte address 0x4 - core index']
  #allocation1 [shape = 'u32[144,128]{1,0:T(1,128)}', space=vmem, size = 0x12000, scoped, tag = 'internal scratch']
  #allocation2 [shape = 'f32[8,128]{1,0:T(8,128)}', space=vmem, size = 0x1000, scoped, tag = 'scratch operand']
  #allocation3 [shape = 'f32[8,128]{1,0:T(8,128)}', space=vmem, size = 0x1000, scoped, tag = 'scratch operand']
  #allocation4 [shape = 'f32[8,128]{1,0:T(8,128)}', space=vmem, size = 0x1000, scoped, tag = 'scratch operand']
  %s0 = inlined_call_operand.hbm [shape: f32[16,128], index: 0, kind: input, shape index: {}]
  %s1 = inlined_call_operand.hbm [shape: f32[16,128], index: 1, kind: input, shape index: {}]
  %s2 = inlined_call_operand.hbm [shape: f32[1,8,128], index: 2, kind: output, shape index: {}]
  %s3 = sld [smem:[#allocation0]]
  $region34: #{tpu_custom_call.1} parent=0
    _
  %s5 = ssub.s32 1, %s3
  %s6 = scalar_select 0, %s5, %s3
  $region1: #{tpu_custom_call.1} parent=0
    #allocation5 [shape = 'u8[8192]{0}', space=vmem, size = 0x2000, scoped, tag = 'input window, operand 0, single buffered']
    #allocation6 [shape = 's32[1]{0}', space=sflag, size = 0x4, scoped, tag = 'scoped memory for tpu_custom_call.1']
    #allocation7 [shape = 's32[1]{0}', space=sflag, size = 0x4, scoped, tag = 'scoped memory for tpu_custom_call.1']
    #allocation8 [shape = 'u8[8192]{0}', space=vmem, size = 0x2000, scoped, tag = 'input window, operand 1, single buffered']
    #allocation9 [shape = 's32[1]{0}', space=sflag, size = 0x4, scoped, tag = 'scoped memory for tpu_custom_call.1']
    #allocation10 [shape = 'u8[4096]{0}', space=vmem, size = 0x1000, scoped, tag = 'output window, operand 0, single buffered']
    %7 = vsyncpa [#allocation6], 0
    %8 = vsyncpa [#allocation9], 0
    %9 = vsyncpa [#allocation7], 0
    // Predicated region
    $region2: #{tpu_custom_call.1} parent=1 // pred_check
      _
    $region3: #{tpu_custom_call.1} parent=1 // pred_check_branch
      %11 = sbr.rel (0) target = $region5
    $region4: #{tpu_custom_call.1} parent=1 // pred_region
      %s12 = sadd.s32 0, 0
      %s13 = smul.u32 2, %s12
      %s15 = ssub.s32 256, 256
      %16 = vsyncadd [#allocation6], %s15
      %s17 = smul.addr %s13, 128
      %s18 = scalar_lea.hbm %s0, %s17
      %s19 = sshll.u32 [#allocation5], 4
      %s20 = int_to_ptr.vmem [resolvable:$true] %s19
      %25 = dma.hbm_to_vmem [thread:$0]  %s18, 256, %s20, [#allocation6], 128, 128, 8
    $region5: #{tpu_custom_call.1} parent=1 // pred_fallthru
      _
    // Predicated region
    $region6: #{tpu_custom_call.1} parent=1 // pred_check
      _
    $region7: #{tpu_custom_call.1} parent=1 // pred_check_branch
      %27 = sbr.rel (0) target = $region9
    $region8: #{tpu_custom_call.1} parent=1 // pred_region
      %s28 = sadd.s32 0, 0
      %s29 = smul.u32 2, %s28
      %s31 = ssub.s32 256, 256
      %32 = vsyncadd [#allocation9], %s31
      %s33 = smul.addr %s29, 128
      %s34 = scalar_lea.hbm %s1, %s33
      %s35 = sshll.u32 [#allocation8], 4
      %s36 = int_to_ptr.vmem [resolvable:$true] %s35
      %41 = dma.hbm_to_vmem [thread:$0]  %s34, 256, %s36, [#allocation9], 128, 128, 8
    $region9: #{tpu_custom_call.1} parent=1 // pred_fallthru
      _
    // Predicated region
    $region10: #{tpu_custom_call.1} parent=1 // pred_check
      _
    $region11: #{tpu_custom_call.1} parent=1 // pred_check_branch
      %43 = sbr.rel (0) target = $region13
    $region12: #{tpu_custom_call.1} parent=1 // pred_region
      %44 = dma.done [#allocation6], 256
    $region13: #{tpu_custom_call.1} parent=1 // pred_fallthru
      _
    // Predicated region
    $region14: #{tpu_custom_call.1} parent=1 // pred_check
      _
    $region15: #{tpu_custom_call.1} parent=1 // pred_check_branch
      %46 = sbr.rel (0) target = $region17
    $region16: #{tpu_custom_call.1} parent=1 // pred_region
      %47 = dma.done [#allocation9], 256
    $region17: #{tpu_custom_call.1} parent=1 // pred_fallthru
      _
    %s48 = sadd.s32 0, 0
    %s49 = smul.u32 2, %s48
    %s50 = sadd.s32 0, 0
    %s51 = smul.u32 2, %s50
    %p52 = scmp.eq.s32.totalorder 0, 0
    // Predicated region
    $region18: #{tpu_custom_call.1} parent=1 // pred_check
      %p53 = pneg %p52
    $region19: #{tpu_custom_call.1} parent=1 // pred_check_branch
      %55 = sbr.rel (%p53) target = $region21
    $region20: #{tpu_custom_call.1} parent=1 // pred_region
      %56 = vst [vmem:[#allocation2] sm:$0xff] 0.0
      %57 = vst [vmem:[#allocation3] sm:$0xff] 0.0
      %58 = vst [vmem:[#allocation4] sm:$0xff] 0.0
    $region21: #{tpu_custom_call.1} parent=1 // pred_fallthru
      _
    %v59 = vld [vmem:[#allocation5] sm:$0xff]
    %v60 = vld [vmem:[#allocation5 + $0x8] sm:$0xff]
    %v61 = vld [vmem:[#allocation8] sm:$0xff]
    %v62 = vld [vmem:[#allocation8 + $0x8] sm:$0xff]
    %v63 = vmul.f32 %v59, 0.5
    %v64 = vmul.f32 %v60, 0.5
    %v65 = vtanh.pop %v63
    %v66 = vtanh.pop %v64
    %v67 = vadd.f32 %v65, 1.0
    %v68 = vadd.f32 %v66, 1.0
    %v69 = vmul.f32 %v67, 0.5
    %v70 = vmul.f32 %v68, 0.5
    %v71 = vld [vmem:[#allocation2] sm:$0xff]
    %v72 = vadd.f32 %v61, %v62
    %v73 = vadd.f32 %v71, %v72
    %74 = vst [vmem:[#allocation2] sm:$0xff] %v73
    %v75 = vld [vmem:[#allocation3] sm:$0xff]
    %v76 = vadd.f32 %v69, %v70
    %v77 = vadd.f32 %v75, %v76
    %78 = vst [vmem:[#allocation3] sm:$0xff] %v77
    %v79 = vld [vmem:[#allocation4] sm:$0xff]
    %v80 = vmul.f32 %v69, %v61
    %v81 = vmul.f32 %v70, %v62
    %v82 = vadd.f32 %v80, %v81
    %v83 = vadd.f32 %v79, %v82
    %84 = vst [vmem:[#allocation4] sm:$0xff] %v83
    // Predicated region
    $region22: #{tpu_custom_call.1} parent=1 // pred_check
      %p85 = pneg %p52
    $region23: #{tpu_custom_call.1} parent=1 // pred_check_branch
      %87 = sbr.rel (%p85) target = $region25
    $region24: #{tpu_custom_call.1} parent=1 // pred_region
      %v88 = vld [vmem:[#allocation2] sm:$0xff]
      %89 = vadd.xlane.f32.xlu0 %v88
      %v90 = vpop.xlane.xlu0 %89
      %v91 = vrot.slane %v90, 4
      %v92 = vadd.f32 %v90, %v91
      %v93 = vrot.slane %v92, 2
      %v94 = vadd.f32 %v92, %v93
      %v95 = vrot.slane %v94, 1
      %v96 = vadd.f32 %v94, %v95
      %s97 = vtos %v96
      %v98 = vld [vmem:[#allocation3] sm:$0xff]
      %99 = vadd.xlane.f32.xlu0 %v98
      %v100 = vpop.xlane.xlu0 %99
      %v101 = vrot.slane %v100, 4
      %v102 = vadd.f32 %v100, %v101
      %v103 = vrot.slane %v102, 2
      %v104 = vadd.f32 %v102, %v103
      %v105 = vrot.slane %v104, 1
      %v106 = vadd.f32 %v104, %v105
      %s107 = vtos %v106
      %v108 = vld [vmem:[#allocation4] sm:$0xff]
      %109 = vadd.xlane.f32.xlu0 %v108
      %v110 = vpop.xlane.xlu0 %109
      %v111 = vrot.slane %v110, 4
      %v112 = vadd.f32 %v110, %v111
      %v113 = vrot.slane %v112, 2
      %v114 = vadd.f32 %v112, %v113
      %v115 = vrot.slane %v114, 1
      %v116 = vadd.f32 %v114, %v115
      %s117 = vtos %v116
      %v118 = vlaneseq
      %v119 = vand.u32 %v118, 127
      %vm120 = vcmp.eq.s32.totalorder %v119, 0
      %vm121 = vcmp.eq.s32.totalorder %v119, 1
      %vm122 = vcmp.eq.s32.totalorder %v119, 2
      %v123 = vstv %s117
      %v124 = vsel %vm122, %v123, 0.0
      %v125 = vstv %s107
      %v126 = vsel %vm121, %v125, %v124
      %v127 = vstv %s97
      %v128 = vsel %vm120, %v127, %v126
      %129 = vst [vmem:[#allocation10] sm:$0xff] %v128
    $region25: #{tpu_custom_call.1} parent=1 // pred_fallthru
      _
    // Predicated region
    $region26: #{tpu_custom_call.1} parent=1 // pred_check
      _
    $region27: #{tpu_custom_call.1} parent=1 // pred_check_branch
      %131 = sbr.rel (0) target = $region29
    $region28: #{tpu_custom_call.1} parent=1 // pred_region
      %s133 = ssub.s32 128, 128
      %134 = vsyncadd [#allocation7], %s133
      %s136 = sshll.u32 [#allocation10], 4
      %s137 = int_to_ptr.vmem [resolvable:$true] %s136
      %139 = dma.vmem_to_hbm [thread:$0]  %s137, 128, %s2, [#allocation7]
    $region29: #{tpu_custom_call.1} parent=1 // pred_fallthru
      _
    // Predicated region
    $region30: #{tpu_custom_call.1} parent=1 // pred_check
      _
    $region31: #{tpu_custom_call.1} parent=1 // pred_check_branch
      %141 = sbr.rel (0) target = $region33
    $region32: #{tpu_custom_call.1} parent=1 // pred_region
      %142 = dma.done [#allocation7], 128
    $region33: #{tpu_custom_call.1} parent=1 // pred_fallthru
      _
    %143 = vsyncpa [#allocation6], 1
    %144 = vsyncpa [#allocation9], 1
    %145 = vsyncpa [#allocation7], 1

</llo_original>
